<compile_context>
chip_gen: v7x
topology: tpu7x:2x2x1
jax: 0.10.0
libtpu: 0.0.40
codegen_flags: <defaults>
</compile_context>

<pallas_src>
import jax
import jax.numpy as jnp
from jax.experimental import pallas as pl
from jax.experimental.pallas import tpu as pltpu

PAD = 128  # lane-width padding for the sample axis (max supported N)


def _kappa_kernel(n_ref, labels_ref, out_ref):
    # n_ref:      (1, 1) int32 in SMEM  -- the true sample count N
    # labels_ref: (2, PAD) int32 in VMEM -- row 0 = gt, row 1 = pred, zero-padded
    # out_ref:    (1, 1) float32 in SMEM
    nf = n_ref[0, 0].astype(jnp.float32)

    f = labels_ref[...].astype(jnp.float32)          # (2, PAD)
    f2 = f * f                                       # (2, PAD)
    cross = f[0:1, :] * f[1:2, :]                    # (1, PAD)

    # Four rank-0 lane reductions over a single vreg's worth of data.
    s1g = jnp.sum(f[0:1, :])                         # sum_k g_k
    s1p = jnp.sum(f[1:2, :])                         # sum_k p_k
    s2_total = jnp.sum(f2)                           # S2g + S2p
    sgp = jnp.sum(cross)                             # sum_k g_k * p_k

    num_unnorm = s2_total - 2.0 * sgp                # = sum_k (g_k - p_k)^2
    den_unnorm = nf * s2_total - 2.0 * s1g * s1p

    out_ref[0, 0] = 1.0 - nf * num_unnorm / den_unnorm


def quadratic_kappa(y_pred, y_gt, *, pad=PAD):
    """y_pred: integer predictions, any squeezable shape; y_gt: (N,) integer labels."""
    y_pred = jnp.squeeze(jnp.asarray(y_pred)).astype(jnp.int32)
    y_gt = jnp.asarray(y_gt).astype(jnp.int32)
    n = int(y_gt.shape[0])
    assert n <= pad, "N must fit in the padded lane width"
    assert n > 1, "N == 1 divides by zero ((N-1)^2), as in the PyTorch reference"

    # Single fused stack+pad; zero padding is harmless for non-negative class labels.
    labels = jnp.pad(jnp.stack([y_gt, y_pred]), ((0, 0), (0, pad - n)))
    n_arr = jnp.full((1, 1), n, dtype=jnp.int32)

    out = pl.pallas_call(
        _kappa_kernel,
        out_shape=jax.ShapeDtypeStruct((1, 1), jnp.float32),
        in_specs=[
            pl.BlockSpec(memory_space=pltpu.MemorySpace.SMEM),   # N scalar
            pl.BlockSpec(memory_space=pltpu.MemorySpace.VMEM),   # packed labels
        ],
        out_specs=pl.BlockSpec(memory_space=pltpu.MemorySpace.SMEM),
    )(n_arr, labels)
    return out[0, 0]


def _reference(y_pred, y_gt):
    """Plain-JAX reference mirroring the PyTorch loop semantics."""
    y_pred = jnp.squeeze(jnp.asarray(y_pred)).astype(jnp.int32)
    y_gt = jnp.asarray(y_gt).astype(jnp.int32)
    n = int(y_gt.shape[0])
    ii = jnp.arange(n, dtype=jnp.float32)[:, None]
    jj = jnp.arange(n, dtype=jnp.float32)[None, :]
    weight = (ii - jj) ** 2 / float((n - 1) ** 2)
    confusion = jnp.zeros((n, n), jnp.float32).at[y_gt, y_pred].add(1.0)
    gt_hist = jnp.zeros((n,), jnp.float32).at[y_gt].add(1.0)
    pred_hist = jnp.zeros((n,), jnp.float32).at[y_pred].add(1.0)
    E = jnp.outer(gt_hist, pred_hist)
    E = E / jnp.sum(E)
    confusion = confusion / jnp.sum(confusion)
    num = jnp.sum(weight * confusion)
    den = jnp.sum(weight * E)
    return 1.0 - num / den


if __name__ == "__main__":
    key = jax.random.PRNGKey(0)
    k1, k2 = jax.random.split(key)

    N = 8  # N = len(y_gt); class values must lie in [0, N) per the module's indexing
    y_gt = jax.random.randint(k1, (N,), 0, N, dtype=jnp.int32)
    y_pred = jax.random.randint(k2, (N, 1), 0, N, dtype=jnp.int32)  # squeezed in forward

    out = quadratic_kappa(y_pred, y_gt)
    out = jax.block_until_ready(out)

    ref = jax.block_until_ready(_reference(y_pred, y_gt))
    assert jnp.allclose(out, ref, atol=1e-5, rtol=1e-5), (out, ref)

    print("KERNEL_OK")
</pallas_src>

<mosaic_0001>
module attributes {stable_mosaic.version = 11 : i64} {
  func.func @_kappa_kernel(%arg0: memref<1x1xi32, #tpu.memory_space<smem>>, %arg1: memref<2x128xi32, #tpu.memory_space<vmem>>, %arg2: memref<1x1xf32, #tpu.memory_space<smem>>) attributes {dimension_semantics = [], scalar_prefetch = 0 : i64, scratch_operands = 0 : i64, tpu.core_type = #tpu.core_type<tc>} {
    %c0 = arith.constant 0 : index
    %c0_0 = arith.constant 0 : index
    %0 = memref.load %arg0[%c0, %c0_0] : memref<1x1xi32, #tpu.memory_space<smem>>
    %1 = arith.sitofp %0 : i32 to f32
    %c0_1 = arith.constant 0 : index
    %c0_2 = arith.constant 0 : index
    %2 = vector.load %arg1[%c0_1, %c0_2] : memref<2x128xi32, #tpu.memory_space<vmem>>, vector<2x128xi32>
    %3 = arith.sitofp %2 : vector<2x128xi32> to vector<2x128xf32>
    %4 = arith.mulf %3, %3 : vector<2x128xf32>
    %5 = vector.extract_strided_slice %3 {offsets = [0, 0], sizes = [1, 128], strides = [1, 1]} : vector<2x128xf32> to vector<1x128xf32>
    %6 = vector.extract_strided_slice %3 {offsets = [1, 0], sizes = [1, 128], strides = [1, 1]} : vector<2x128xf32> to vector<1x128xf32>
    %7 = arith.mulf %5, %6 : vector<1x128xf32>
    %8 = vector.extract_strided_slice %3 {offsets = [0, 0], sizes = [1, 128], strides = [1, 1]} : vector<2x128xf32> to vector<1x128xf32>
    %9 = vector.shape_cast %8 : vector<1x128xf32> to vector<1x1x128xf32>
    %cst = arith.constant dense<0.000000e+00> : vector<1xf32>
    %10 = vector.multi_reduction <add>, %9, %cst [1, 2] : vector<1x1x128xf32> to vector<1xf32>
    %11 = vector.shape_cast %10 : vector<1xf32> to vector<1x1x1xf32>
    %12 = vector.extract %11[0, 0, 0] : f32 from vector<1x1x1xf32>
    %13 = vector.extract_strided_slice %3 {offsets = [1, 0], sizes = [1, 128], strides = [1, 1]} : vector<2x128xf32> to vector<1x128xf32>
    %14 = vector.shape_cast %13 : vector<1x128xf32> to vector<1x1x128xf32>
    %cst_3 = arith.constant dense<0.000000e+00> : vector<1xf32>
    %15 = vector.multi_reduction <add>, %14, %cst_3 [1, 2] : vector<1x1x128xf32> to vector<1xf32>
    %16 = vector.shape_cast %15 : vector<1xf32> to vector<1x1x1xf32>
    %17 = vector.extract %16[0, 0, 0] : f32 from vector<1x1x1xf32>
    %18 = vector.shape_cast %4 : vector<2x128xf32> to vector<1x2x128xf32>
    %cst_4 = arith.constant dense<0.000000e+00> : vector<1xf32>
    %19 = vector.multi_reduction <add>, %18, %cst_4 [1, 2] : vector<1x2x128xf32> to vector<1xf32>
    %20 = vector.shape_cast %19 : vector<1xf32> to vector<1x1x1xf32>
    %21 = vector.extract %20[0, 0, 0] : f32 from vector<1x1x1xf32>
    %22 = vector.shape_cast %7 : vector<1x128xf32> to vector<1x1x128xf32>
    %cst_5 = arith.constant dense<0.000000e+00> : vector<1xf32>
    %23 = vector.multi_reduction <add>, %22, %cst_5 [1, 2] : vector<1x1x128xf32> to vector<1xf32>
    %24 = vector.shape_cast %23 : vector<1xf32> to vector<1x1x1xf32>
    %25 = vector.extract %24[0, 0, 0] : f32 from vector<1x1x1xf32>
    %cst_6 = arith.constant 2.000000e+00 : f32
    %26 = arith.mulf %cst_6, %25 : f32
    %27 = arith.subf %21, %26 : f32
    %28 = arith.mulf %1, %21 : f32
    %cst_7 = arith.constant 2.000000e+00 : f32
    %29 = arith.mulf %cst_7, %12 : f32
    %30 = arith.mulf %29, %17 : f32
    %31 = arith.subf %28, %30 : f32
    %32 = arith.mulf %1, %27 : f32
    %33 = arith.divf %32, %31 : f32
    %cst_8 = arith.constant 1.000000e+00 : f32
    %34 = arith.subf %cst_8, %33 : f32
    %c0_9 = arith.constant 0 : index
    %c0_10 = arith.constant 0 : index
    %35 = memref.load %arg2[%c0_9, %c0_10] : memref<1x1xf32, #tpu.memory_space<smem>>
    memref.store %34, %arg2[%c0_9, %c0_10] : memref<1x1xf32, #tpu.memory_space<smem>>
    return
  }
}

</mosaic_0001>

<llo_original>
// kernel: tpu_custom_call.1
$region0: #{tpu_custom_call.1}
  #allocation0 [shape = 'u32[]', space=smem, size = 0x4, offset = 0x4, fixed_abs, tag = 'smem constant byte address 0x4 - core index']
  #allocation1 [shape = 'u32[144,128]{1,0:T(1,128)}', space=vmem, size = 0x12000, scoped, tag = 'internal scratch']
  #allocation2 [shape = 's32[1,1]{1,0:T(1,128)S(6)}', space=smem, size = 0x200, scoped, tag = 'scoped memory for tpu_custom_call.1']
  %s0 = inlined_call_operand.<no memory space> [shape: s32[1,1], index: 0, kind: input, shape index: {}]
  %s1 = inlined_call_operand.vmem [shape: s32[2,128], index: 1, kind: input, shape index: {}]
  %s2 = inlined_call_operand.hbm [shape: f32[1,1], index: 2, kind: output, shape index: {}]
  %s3 = sld [smem:[#allocation0]]
  $region18: #{tpu_custom_call.1} parent=0
    _
  %s5 = ssub.s32 1, %s3
  %s6 = scalar_select 0, %s5, %s3
  %7 = sst [smem:[#allocation2]] %s0
  $region1: #{tpu_custom_call.1} parent=0
    #allocation3 [shape = 'u8[512]{0}', space=smem, size = 0x200, scoped, tag = 'output window, operand 0, single buffered']
    #allocation4 [shape = 's32[1]{0}', space=sflag, size = 0x4, scoped, tag = 'scoped memory for tpu_custom_call.1']
    %8 = vsyncpa [#allocation4], 0
    // Predicated region
    $region2: #{tpu_custom_call.1} parent=1 // pred_check
      _
    $region3: #{tpu_custom_call.1} parent=1 // pred_check_branch
      %10 = sbr.rel (0) target = $region5
    $region4: #{tpu_custom_call.1} parent=1 // pred_region
      _
    $region5: #{tpu_custom_call.1} parent=1 // pred_fallthru
      _
    // Predicated region
    $region6: #{tpu_custom_call.1} parent=1 // pred_check
      _
    $region7: #{tpu_custom_call.1} parent=1 // pred_check_branch
      %12 = sbr.rel (0) target = $region9
    $region8: #{tpu_custom_call.1} parent=1 // pred_region
      _
    $region9: #{tpu_custom_call.1} parent=1 // pred_fallthru
      _
    %s13 = sld [smem:[#allocation2]]
    %s14 = scvt.s32.f32 %s13
    %v15 = vld [vmem:[%s1] sm:$0x3]
    %v16 = vcvt.s32.f32 %v15
    %v17 = vmul.f32 %v16, %v16
    %v19 = vrot.slane %v16, 1
    %v21 = vmul.f32 %v16, %v19
    %vm22 = vcmask 1040384
    %v23 = vsel %vm22, %v16, 0.0
    %24 = vadd.xlane.f32.xlu0 %v23
    %v25 = vpop.xlane.xlu0 %24
    %v26 = vrot.slane %v25, 4
    %v27 = vadd.f32 %v25, %v26
    %v28 = vrot.slane %v27, 2
    %v29 = vadd.f32 %v27, %v28
    %v30 = vrot.slane %v29, 1
    %v31 = vadd.f32 %v29, %v30
    %s32 = vtos %v31
    %v33 = vsel %vm22, %v19, 0.0
    %34 = vadd.xlane.f32.xlu0 %v33
    %v35 = vpop.xlane.xlu0 %34
    %v36 = vrot.slane %v35, 4
    %v37 = vadd.f32 %v35, %v36
    %v38 = vrot.slane %v37, 2
    %v39 = vadd.f32 %v37, %v38
    %v40 = vrot.slane %v39, 1
    %v41 = vadd.f32 %v39, %v40
    %s42 = vtos %v41
    %vm43 = vcmask 1041408
    %v44 = vsel %vm43, %v17, 0.0
    %45 = vadd.xlane.f32.xlu0 %v44
    %v46 = vpop.xlane.xlu0 %45
    %v47 = vrot.slane %v46, 4
    %v48 = vadd.f32 %v46, %v47
    %v49 = vrot.slane %v48, 2
    %v50 = vadd.f32 %v48, %v49
    %v51 = vrot.slane %v50, 1
    %v52 = vadd.f32 %v50, %v51
    %s53 = vtos %v52
    %v54 = vsel %vm22, %v21, 0.0
    %55 = vadd.xlane.f32.xlu0 %v54
    %v56 = vpop.xlane.xlu0 %55
    %v57 = vrot.slane %v56, 4
    %v58 = vadd.f32 %v56, %v57
    %v59 = vrot.slane %v58, 2
    %v60 = vadd.f32 %v58, %v59
    %v61 = vrot.slane %v60, 1
    %v62 = vadd.f32 %v60, %v61
    %s63 = vtos %v62
    %s64 = smul.f32 %s63, 2.0
    %s65 = ssub.f32 %s53, %s64
    %s66 = smul.f32 %s14, %s53
    %s67 = smul.f32 %s32, 2.0
    %s68 = smul.f32 %s67, %s42
    %s69 = ssub.f32 %s66, %s68
    %s70 = smul.f32 %s14, %s65
    %v71 = vstv %s69
    %v72 = vrcp.pop %v71
    %s73 = vtos %v72
    %s74 = smul.f32 %s70, %s73
    %s75 = ssub.f32 1.0, %s74
    %s76 = scalar_lea.smem [#allocation3], 0
    %77 = sst [smem:[%s76]] %s75
    // Predicated region
    $region10: #{tpu_custom_call.1} parent=1 // pred_check
      _
    $region11: #{tpu_custom_call.1} parent=1 // pred_check_branch
      %79 = sbr.rel (0) target = $region13
    $region12: #{tpu_custom_call.1} parent=1 // pred_region
      %s81 = ssub.s32 16, 16
      %82 = vsyncadd [#allocation4], %s81
      %85 = dma.smem_to_hbm [#allocation3], 16, %s2, [#allocation4]
    $region13: #{tpu_custom_call.1} parent=1 // pred_fallthru
      _
    // Predicated region
    $region14: #{tpu_custom_call.1} parent=1 // pred_check
      _
    $region15: #{tpu_custom_call.1} parent=1 // pred_check_branch
      %87 = sbr.rel (0) target = $region17
    $region16: #{tpu_custom_call.1} parent=1 // pred_region
      %88 = dma.done [#allocation4], 16
    $region17: #{tpu_custom_call.1} parent=1 // pred_fallthru
      _
    %89 = sfence
    %90 = vsyncpa [#allocation4], 1

</llo_original>
